<compile_context>
chip_gen: v5e
topology: v5e:2x2
jax: 0.10.0
libtpu: 0.0.40
codegen_flags: <defaults>
</compile_context>

<pallas_src>
import jax
import jax.numpy as jnp
from jax.experimental import pallas as pl
from jax.experimental.pallas import tpu as pltpu


def _log_sigmoid(z):
    # Numerically stable log-sigmoid using only ops with solid Mosaic lowering:
    #   logsigmoid(z) = min(z, 0) - log(1 + exp(-|z|))
    return jnp.minimum(z, 0.0) - jnp.log(1.0 + jnp.exp(-jnp.abs(z)))


def _bnre_kernel(scalars_ref, theta2_ref, x_ref,
                 w1t_ref, w1x_ref, b1_ref, w2_ref,
                 out_ref):
    n = x_ref.shape[0]
    inv_n = 1.0 / n

    lmbda = scalars_ref[0]            # runtime scalar (SMEM)
    b2 = scalars_ref[1]               # second-layer bias (SMEM scalar)

    theta2 = theta2_ref[...]          # (2N, D): rows [theta; roll(theta, 1)]
    x = x_ref[...]                    # (N, L)
    w1t = w1t_ref[...]                # (D, H)
    w1x = w1x_ref[...]                # (L, H)
    b1 = b1_ref[...]                  # (1, H)
    w2 = w2_ref[...]                  # (1, H)  second-layer weights as a row

    # ---- Layer 1 ----
    # Shared x contribution, computed once for both passes.
    hx = jnp.dot(x, w1x, preferred_element_type=jnp.float32) + b1       # (N, H)
    # Single fused MXU pass over the stacked [theta; theta'] rows.
    ht2 = jnp.dot(theta2, w1t, preferred_element_type=jnp.float32)      # (2N, H)
    h = jnp.maximum(ht2[:n] + hx, 0.0)     # hidden for (theta_i,  x_i)
    hp = jnp.maximum(ht2[n:] + hx, 0.0)    # hidden for (theta'_i, x_i)

    # ---- Layer 2 ----
    # (H, 1) matmul (1 useful output lane) -> VPU multiply + lane reduction.
    log_r = jnp.sum(h * w2, axis=-1, keepdims=True) + b2                # (N, 1)
    log_rp = jnp.sum(hp * w2, axis=-1, keepdims=True) + b2              # (N, 1)

    # ---- Loss ----
    ls1 = _log_sigmoid(log_r)        # logsigmoid(log_r)
    ls0 = _log_sigmoid(-log_rp)      # logsigmoid(-log_r')
    # Reuse the transcendentals for the balancing term:
    #   sigmoid(log_r)  = exp(logsigmoid(log_r))
    #   sigmoid(log_r') = 1 - exp(logsigmoid(-log_r'))
    sig_r = jnp.exp(ls1)
    sig_rp = 1.0 - jnp.exp(ls0)

    l1 = -jnp.sum(ls1, axis=0, keepdims=True) * inv_n                   # (1, 1)
    l0 = -jnp.sum(ls0, axis=0, keepdims=True) * inv_n                   # (1, 1)
    bal = jnp.sum(sig_r + sig_rp - 1.0, axis=0, keepdims=True) * inv_n  # (1, 1)
    lb = bal * bal

    out_ref[...] = (l1 + l0) * 0.5 + lmbda * lb


def bnre_loss(theta, x, params, lmbda=100.0):
    """theta: (N, D), x: (N, L) -> scalar loss (float32)."""
    w1t, w1x, b1, w2, b2 = params
    h_dim = w1t.shape[1]

    # Glue (XLA side, tiny): cyclic batch shift + stacking of the two theta
    # passes so the kernel needs only ONE layer-1 matmul for them.
    theta_prime = jnp.roll(theta, 1, axis=0)
    theta2 = jnp.concatenate([theta, theta_prime], axis=0)      # (2N, D)
    w2_row = w2.reshape(1, h_dim).astype(jnp.float32)           # (1, H)
    b1_row = b1.reshape(1, h_dim).astype(jnp.float32)           # (1, H)
    scalars = jnp.concatenate([
        jnp.full((1,), lmbda, dtype=jnp.float32),
        b2.reshape(-1).astype(jnp.float32),
    ])                                                          # (2,)

    out = pl.pallas_call(
        _bnre_kernel,
        out_shape=jax.ShapeDtypeStruct((1, 1), jnp.float32),
        # No grid: every operand is small and staged whole into VMEM/SMEM.
        in_specs=[pl.BlockSpec(memory_space=pltpu.MemorySpace.SMEM)]
        + [pl.BlockSpec(memory_space=pltpu.MemorySpace.VMEM)] * 6,
        out_specs=pl.BlockSpec(memory_space=pltpu.MemorySpace.VMEM),
    )(scalars, theta2, x, w1t, w1x, b1_row, w2_row)
    return out[0, 0]


def _reference(theta, x, params, lmbda=100.0):
    """Pure-JAX reference (faithful translation of the PyTorch module)."""
    w1t, w1x, b1, w2, b2 = params
    theta_prime = jnp.roll(theta, 1, axis=0)

    def log_ratio(t):
        h = jax.nn.relu(t @ w1t + x @ w1x + b1)
        return h @ w2 + b2

    log_r = log_ratio(theta)
    log_r_p = log_ratio(theta_prime)
    l1 = -jnp.mean(jax.nn.log_sigmoid(log_r))
    l0 = -jnp.mean(jax.nn.log_sigmoid(-log_r_p))
    lb = jnp.square(jnp.mean(jax.nn.sigmoid(log_r) + jax.nn.sigmoid(log_r_p) - 1.0))
    return (l1 + l0) / 2 + lmbda * lb


if __name__ == "__main__":
    # Small shapes: N pairs of (theta in R^D, x in R^L), hidden width H.
    N, D, L, H = 8, 4, 16, 32
    lmbda = 100.0

    key = jax.random.PRNGKey(0)
    k_theta, k_x, k_w1t, k_w1x, k_w2 = jax.random.split(key, 5)

    theta = jax.random.normal(k_theta, (N, D), dtype=jnp.float32)
    x = jax.random.normal(k_x, (N, L), dtype=jnp.float32)

    # Deterministic synthetic estimator parameters (2-layer MLP on [theta, x]).
    w1t = jax.random.normal(k_w1t, (D, H), dtype=jnp.float32) * (1.0 / jnp.sqrt(D + L))
    w1x = jax.random.normal(k_w1x, (L, H), dtype=jnp.float32) * (1.0 / jnp.sqrt(D + L))
    b1 = jnp.zeros((1, H), dtype=jnp.float32)
    w2 = jax.random.normal(k_w2, (H, 1), dtype=jnp.float32) * (1.0 / jnp.sqrt(H))
    b2 = jnp.zeros((1, 1), dtype=jnp.float32)
    params = (w1t, w1x, b1, w2, b2)

    loss = jax.block_until_ready(bnre_loss(theta, x, params, lmbda=lmbda))
    ref = jax.block_until_ready(_reference(theta, x, params, lmbda=lmbda))
    assert jnp.allclose(loss, ref, rtol=1e-5, atol=1e-5), (loss, ref)

    print("KERNEL_OK")
</pallas_src>

<mosaic_0001>
module attributes {stable_mosaic.version = 11 : i64} {
  func.func @_bnre_kernel(%arg0: memref<2xf32, #tpu.memory_space<smem>>, %arg1: memref<16x4xf32, #tpu.memory_space<vmem>>, %arg2: memref<8x16xf32, #tpu.memory_space<vmem>>, %arg3: memref<4x32xf32, #tpu.memory_space<vmem>>, %arg4: memref<16x32xf32, #tpu.memory_space<vmem>>, %arg5: memref<1x32xf32, #tpu.memory_space<vmem>>, %arg6: memref<1x32xf32, #tpu.memory_space<vmem>>, %arg7: memref<1x1xf32, #tpu.memory_space<vmem>>) attributes {dimension_semantics = [], scalar_prefetch = 0 : i64, scratch_operands = 0 : i64, tpu.core_type = #tpu.core_type<tc>} {
    %c0 = arith.constant 0 : index
    %0 = memref.load %arg0[%c0] : memref<2xf32, #tpu.memory_space<smem>>
    %c1 = arith.constant 1 : index
    %1 = memref.load %arg0[%c1] : memref<2xf32, #tpu.memory_space<smem>>
    %c0_0 = arith.constant 0 : index
    %c0_1 = arith.constant 0 : index
    %2 = vector.load %arg1[%c0_0, %c0_1] : memref<16x4xf32, #tpu.memory_space<vmem>>, vector<16x4xf32>
    %c0_2 = arith.constant 0 : index
    %c0_3 = arith.constant 0 : index
    %3 = vector.load %arg2[%c0_2, %c0_3] : memref<8x16xf32, #tpu.memory_space<vmem>>, vector<8x16xf32>
    %c0_4 = arith.constant 0 : index
    %c0_5 = arith.constant 0 : index
    %4 = vector.load %arg3[%c0_4, %c0_5] : memref<4x32xf32, #tpu.memory_space<vmem>>, vector<4x32xf32>
    %c0_6 = arith.constant 0 : index
    %c0_7 = arith.constant 0 : index
    %5 = vector.load %arg4[%c0_6, %c0_7] : memref<16x32xf32, #tpu.memory_space<vmem>>, vector<16x32xf32>
    %c0_8 = arith.constant 0 : index
    %c0_9 = arith.constant 0 : index
    %6 = vector.load %arg5[%c0_8, %c0_9] : memref<1x32xf32, #tpu.memory_space<vmem>>, vector<1x32xf32>
    %c0_10 = arith.constant 0 : index
    %c0_11 = arith.constant 0 : index
    %7 = vector.load %arg6[%c0_10, %c0_11] : memref<1x32xf32, #tpu.memory_space<vmem>>, vector<1x32xf32>
    %cst = arith.constant dense<0.000000e+00> : vector<8x32xf32>
    %8 = tpu.matmul %3, %5, %cst {dimension_numbers = #tpu.dot_dimension_numbers<[1], [0], [0], [1], [0, 0, 1, 1], [], []>} : vector<8x16xf32>, vector<16x32xf32>, vector<8x32xf32> -> vector<8x32xf32>
    %9 = vector.broadcast %6 : vector<1x32xf32> to vector<8x32xf32>
    %10 = arith.addf %8, %9 : vector<8x32xf32>
    %cst_12 = arith.constant dense<0.000000e+00> : vector<16x32xf32>
    %11 = tpu.matmul %2, %4, %cst_12 {dimension_numbers = #tpu.dot_dimension_numbers<[1], [0], [0], [1], [0, 0, 1, 1], [], []>} : vector<16x4xf32>, vector<4x32xf32>, vector<16x32xf32> -> vector<16x32xf32>
    %12 = vector.extract_strided_slice %11 {offsets = [0, 0], sizes = [8, 32], strides = [1, 1]} : vector<16x32xf32> to vector<8x32xf32>
    %13 = arith.addf %12, %10 : vector<8x32xf32>
    %cst_13 = arith.constant 0.000000e+00 : f32
    %14 = vector.broadcast %cst_13 : f32 to vector<8x32xf32>
    %15 = arith.maximumf %13, %14 : vector<8x32xf32>
    %16 = vector.extract_strided_slice %11 {offsets = [8, 0], sizes = [8, 32], strides = [1, 1]} : vector<16x32xf32> to vector<8x32xf32>
    %17 = arith.addf %16, %10 : vector<8x32xf32>
    %cst_14 = arith.constant 0.000000e+00 : f32
    %18 = vector.broadcast %cst_14 : f32 to vector<8x32xf32>
    %19 = arith.maximumf %17, %18 : vector<8x32xf32>
    %20 = vector.broadcast %7 : vector<1x32xf32> to vector<8x32xf32>
    %21 = arith.mulf %15, %20 : vector<8x32xf32>
    %cst_15 = arith.constant dense<0.000000e+00> : vector<8xf32>
    %22 = vector.multi_reduction <add>, %21, %cst_15 [1] : vector<8x32xf32> to vector<8xf32>
    %23 = vector.shape_cast %22 : vector<8xf32> to vector<8x1xf32>
    %24 = vector.broadcast %1 : f32 to vector<8x1xf32>
    %25 = arith.addf %23, %24 : vector<8x1xf32>
    %26 = vector.broadcast %7 : vector<1x32xf32> to vector<8x32xf32>
    %27 = arith.mulf %19, %26 : vector<8x32xf32>
    %cst_16 = arith.constant dense<0.000000e+00> : vector<8xf32>
    %28 = vector.multi_reduction <add>, %27, %cst_16 [1] : vector<8x32xf32> to vector<8xf32>
    %29 = vector.shape_cast %28 : vector<8xf32> to vector<8x1xf32>
    %30 = vector.broadcast %1 : f32 to vector<8x1xf32>
    %31 = arith.addf %29, %30 : vector<8x1xf32>
    %cst_17 = arith.constant 0.000000e+00 : f32
    %32 = vector.broadcast %cst_17 : f32 to vector<8x1xf32>
    %33 = arith.minimumf %25, %32 : vector<8x1xf32>
    %34 = math.absf %25 : vector<8x1xf32>
    %cst_18 = arith.constant 0.000000e+00 : f32
    %35 = vector.broadcast %cst_18 : f32 to vector<8x1xf32>
    %36 = arith.subf %35, %34 : vector<8x1xf32>
    %37 = math.exp %36 : vector<8x1xf32>
    %cst_19 = arith.constant 1.000000e+00 : f32
    %38 = vector.broadcast %cst_19 : f32 to vector<8x1xf32>
    %39 = arith.addf %38, %37 : vector<8x1xf32>
    %40 = math.log %39 : vector<8x1xf32>
    %41 = arith.subf %33, %40 : vector<8x1xf32>
    %cst_20 = arith.constant 0.000000e+00 : f32
    %42 = vector.broadcast %cst_20 : f32 to vector<8x1xf32>
    %43 = arith.subf %42, %31 : vector<8x1xf32>
    %cst_21 = arith.constant 0.000000e+00 : f32
    %44 = vector.broadcast %cst_21 : f32 to vector<8x1xf32>
    %45 = arith.minimumf %43, %44 : vector<8x1xf32>
    %46 = math.absf %43 : vector<8x1xf32>
    %cst_22 = arith.constant 0.000000e+00 : f32
    %47 = vector.broadcast %cst_22 : f32 to vector<8x1xf32>
    %48 = arith.subf %47, %46 : vector<8x1xf32>
    %49 = math.exp %48 : vector<8x1xf32>
    %cst_23 = arith.constant 1.000000e+00 : f32
    %50 = vector.broadcast %cst_23 : f32 to vector<8x1xf32>
    %51 = arith.addf %50, %49 : vector<8x1xf32>
    %52 = math.log %51 : vector<8x1xf32>
    %53 = arith.subf %45, %52 : vector<8x1xf32>
    %54 = math.exp %41 : vector<8x1xf32>
    %55 = math.exp %53 : vector<8x1xf32>
    %cst_24 = arith.constant 1.000000e+00 : f32
    %56 = vector.broadcast %cst_24 : f32 to vector<8x1xf32>
    %57 = arith.subf %56, %55 : vector<8x1xf32>
    %cst_25 = arith.constant dense<0.000000e+00> : vector<1xf32>
    %58 = vector.multi_reduction <add>, %41, %cst_25 [0] : vector<8x1xf32> to vector<1xf32>
    %59 = vector.shape_cast %58 : vector<1xf32> to vector<1x1xf32>
    %cst_26 = arith.constant 0.000000e+00 : f32
    %60 = vector.broadcast %cst_26 : f32 to vector<1x1xf32>
    %61 = arith.subf %60, %59 : vector<1x1xf32>
    %cst_27 = arith.constant 1.250000e-01 : f32
    %62 = vector.broadcast %cst_27 : f32 to vector<1x1xf32>
    %63 = arith.mulf %61, %62 : vector<1x1xf32>
    %cst_28 = arith.constant dense<0.000000e+00> : vector<1xf32>
    %64 = vector.multi_reduction <add>, %53, %cst_28 [0] : vector<8x1xf32> to vector<1xf32>
    %65 = vector.shape_cast %64 : vector<1xf32> to vector<1x1xf32>
    %cst_29 = arith.constant 0.000000e+00 : f32
    %66 = vector.broadcast %cst_29 : f32 to vector<1x1xf32>
    %67 = arith.subf %66, %65 : vector<1x1xf32>
    %cst_30 = arith.constant 1.250000e-01 : f32
    %68 = vector.broadcast %cst_30 : f32 to vector<1x1xf32>
    %69 = arith.mulf %67, %68 : vector<1x1xf32>
    %70 = arith.addf %54, %57 : vector<8x1xf32>
    %cst_31 = arith.constant 1.000000e+00 : f32
    %71 = vector.broadcast %cst_31 : f32 to vector<8x1xf32>
    %72 = arith.subf %70, %71 : vector<8x1xf32>
    %cst_32 = arith.constant dense<0.000000e+00> : vector<1xf32>
    %73 = vector.multi_reduction <add>, %72, %cst_32 [0] : vector<8x1xf32> to vector<1xf32>
    %74 = vector.shape_cast %73 : vector<1xf32> to vector<1x1xf32>
    %cst_33 = arith.constant 1.250000e-01 : f32
    %75 = vector.broadcast %cst_33 : f32 to vector<1x1xf32>
    %76 = arith.mulf %74, %75 : vector<1x1xf32>
    %77 = arith.mulf %76, %76 : vector<1x1xf32>
    %78 = arith.addf %63, %69 : vector<1x1xf32>
    %cst_34 = arith.constant 5.000000e-01 : f32
    %79 = vector.broadcast %cst_34 : f32 to vector<1x1xf32>
    %80 = arith.mulf %78, %79 : vector<1x1xf32>
    %81 = vector.broadcast %0 : f32 to vector<1x1xf32>
    %82 = arith.mulf %81, %77 : vector<1x1xf32>
    %83 = arith.addf %80, %82 : vector<1x1xf32>
    %c0_35 = arith.constant 0 : index
    %c0_36 = arith.constant 0 : index
    %84 = vector.load %arg7[%c0_35, %c0_36] : memref<1x1xf32, #tpu.memory_space<vmem>>, vector<1x1xf32>
    tpu.vector_store %arg7[%c0_35, %c0_36], %83 {strides = array<i32>} : memref<1x1xf32, #tpu.memory_space<vmem>>, vector<1x1xf32>,
    return
  }
}

</mosaic_0001>

<llo_original>
// kernel: tpu_custom_call.1
$region0: #{tpu_custom_call.1}
  #allocation0 [shape = 'u32[]', space=smem, size = 0x4, offset = 0x4, fixed_abs, tag = 'smem constant byte address 0x4 - core index']
  #allocation1 [shape = 'u32[72,128]{1,0:T(1,128)}', space=vmem, size = 0x9000, scoped, tag = 'internal scratch']
  %s0 = inlined_call_operand.vmem [shape: f32[2], index: 0, kind: input, shape index: {}]
  %s1 = inlined_call_operand.vmem [shape: f32[16,4], index: 1, kind: input, shape index: {}]
  %s2 = inlined_call_operand.hbm [shape: f32[8,16], index: 2, kind: input, shape index: {}]
  %s3 = inlined_call_operand.vmem [shape: f32[4,32], index: 3, kind: input, shape index: {}]
  %s4 = inlined_call_operand.vmem [shape: f32[16,32], index: 4, kind: input, shape index: {}]
  %s5 = inlined_call_operand.vmem [shape: f32[1,32], index: 5, kind: input, shape index: {}]
  %s6 = inlined_call_operand.vmem [shape: f32[1,32], index: 6, kind: input, shape index: {}]
  %s7 = inlined_call_operand.hbm [shape: f32[1,1], index: 7, kind: output, shape index: {}]
  %s8 = sld [smem:[#allocation0]]
  $region46: #{tpu_custom_call.1} parent=0
    _
  %s10 = ssub.s32 1, %s8
  %s11 = scalar_select 0, %s10, %s8
  $region1: #{tpu_custom_call.1} parent=0
    #allocation2 [shape = 'u8[512]{0}', space=smem, size = 0x200, scoped, tag = 'input window, operand 0, single buffered']
    #allocation3 [shape = 's32[1]{0}', space=sflag, size = 0x4, scoped, tag = 'scoped memory for tpu_custom_call.1']
    #allocation4 [shape = 's32[1]{0}', space=sflag, size = 0x4, scoped, tag = 'scoped memory for tpu_custom_call.1']
    #allocation5 [shape = 's32[1]{0}', space=sflag, size = 0x4, scoped, tag = 'scoped memory for tpu_custom_call.1']
    #allocation6 [shape = 'u8[4096]{0}', space=vmem, size = 0x1000, scoped, tag = 'input window, operand 2, single buffered']
    #allocation7 [shape = 'u8[512]{0}', space=vmem, size = 0x400, scoped, tag = 'output window, operand 0, single buffered']
    %12 = vsyncpa [#allocation5], 0
    %13 = vsyncpa [#allocation3], 0
    %14 = vsyncpa [#allocation4], 0
    // Predicated region
    $region2: #{tpu_custom_call.1} parent=1 // pred_check
      _
    $region3: #{tpu_custom_call.1} parent=1 // pred_check_branch
      %16 = sbr.rel (0) target = $region5
    $region4: #{tpu_custom_call.1} parent=1 // pred_region
      %18 = vsyncadd [#allocation5], 0
      %s20 = sshll.u32 %s0, 4
      %s21 = int_to_ptr.vmem [resolvable:$true] %s20
      %23 = dma.vmem_to_smem %s21, 16, [#allocation2], [#allocation5]
    $region5: #{tpu_custom_call.1} parent=1 // pred_fallthru
      _
    // Predicated region
    $region6: #{tpu_custom_call.1} parent=1 // pred_check
      _
    $region7: #{tpu_custom_call.1} parent=1 // pred_check_branch
      %25 = sbr.rel (0) target = $region9
    $region8: #{tpu_custom_call.1} parent=1 // pred_region
      _
    $region9: #{tpu_custom_call.1} parent=1 // pred_fallthru
      _
    // Predicated region
    $region10: #{tpu_custom_call.1} parent=1 // pred_check
      _
    $region11: #{tpu_custom_call.1} parent=1 // pred_check_branch
      %27 = sbr.rel (0) target = $region13
    $region12: #{tpu_custom_call.1} parent=1 // pred_region
      %29 = vsyncadd [#allocation3], 0
      %s31 = sshll.u32 %s2, 4
      %s32 = int_to_ptr.hbm [resolvable:$true] %s31
      %s33 = sshll.u32 [#allocation6], 4
      %s34 = int_to_ptr.vmem [resolvable:$true] %s33
      %36 = dma.hbm_to_vmem [thread:$0]  %s32, 128, %s34, [#allocation3]
    $region13: #{tpu_custom_call.1} parent=1 // pred_fallthru
      _
    // Predicated region
    $region14: #{tpu_custom_call.1} parent=1 // pred_check
      _
    $region15: #{tpu_custom_call.1} parent=1 // pred_check_branch
      %38 = sbr.rel (0) target = $region17
    $region16: #{tpu_custom_call.1} parent=1 // pred_region
      _
    $region17: #{tpu_custom_call.1} parent=1 // pred_fallthru
      _
    // Predicated region
    $region18: #{tpu_custom_call.1} parent=1 // pred_check
      _
    $region19: #{tpu_custom_call.1} parent=1 // pred_check_branch
      %40 = sbr.rel (0) target = $region21
    $region20: #{tpu_custom_call.1} parent=1 // pred_region
      _
    $region21: #{tpu_custom_call.1} parent=1 // pred_fallthru
      _
    // Predicated region
    $region22: #{tpu_custom_call.1} parent=1 // pred_check
      _
    $region23: #{tpu_custom_call.1} parent=1 // pred_check_branch
      %42 = sbr.rel (0) target = $region25
    $region24: #{tpu_custom_call.1} parent=1 // pred_region
      _
    $region25: #{tpu_custom_call.1} parent=1 // pred_fallthru
      _
    // Predicated region
    $region26: #{tpu_custom_call.1} parent=1 // pred_check
      _
    $region27: #{tpu_custom_call.1} parent=1 // pred_check_branch
      %44 = sbr.rel (0) target = $region29
    $region28: #{tpu_custom_call.1} parent=1 // pred_region
      _
    $region29: #{tpu_custom_call.1} parent=1 // pred_fallthru
      _
    // Predicated region
    $region30: #{tpu_custom_call.1} parent=1 // pred_check
      _
    $region31: #{tpu_custom_call.1} parent=1 // pred_check_branch
      %46 = sbr.rel (0) target = $region33
    $region32: #{tpu_custom_call.1} parent=1 // pred_region
      %48 = dma.done [#allocation5], 16
    $region33: #{tpu_custom_call.1} parent=1 // pred_fallthru
      _
    // Predicated region
    $region34: #{tpu_custom_call.1} parent=1 // pred_check
      _
    $region35: #{tpu_custom_call.1} parent=1 // pred_check_branch
      %50 = sbr.rel (0) target = $region37
    $region36: #{tpu_custom_call.1} parent=1 // pred_region
      %52 = dma.done [#allocation3], 128
    $region37: #{tpu_custom_call.1} parent=1 // pred_fallthru
      _
    %53 = sfence
    %s54 = sld [smem:[#allocation2]]
    %s55 = sld [smem:[#allocation2 + $0x1]]
    %v56 = vld [vmem:[%s1] sm:$0xff]
    %v57 = vld [vmem:[%s1 + $0x8] sm:$0xff]
    %v58 = vld [vmem:[#allocation6] sm:$0xff]
    %v59 = vld [vmem:[%s3] sm:$0xf]
    %v60 = vld [vmem:[%s4] sm:$0xff]
    %v61 = vld [vmem:[%s4 + $0x8] sm:$0xff]
    %v62 = vld [vmem:[%s5] sm:$0x1]
    %v63 = vld [vmem:[%s6] sm:$0x1]
    %v65 = vperm.slane %v62, 0
    %vm67 = vcmask 130048
    %v69 = vsel %vm67, %v58, 0
    %71 = vmatpush.msra.mxu0 0.0
    %72 = vmatpush.msra.mxu0 0.0
    %73 = vmatpush.msra.mxu0 0.0
    %74 = vmatpush.msra.mxu0 0.0
    %75 = vmatpush.msra.mxu0 0.0
    %76 = vmatpush.msra.mxu0 0.0
    %77 = vmatpush.msra.mxu0 0.0
    %78 = vmatpush.msra.mxu0 0.0
    %79 = vmatpush.msra.mxu0 0.0
    %80 = vmatpush.msra.mxu0 0.0
    %81 = vmatpush.msra.mxu0 0.0
    %82 = vmatpush.msra.mxu0 0.0
    %83 = vmatpush.msra.mxu0 0.0
    %84 = vmatpush.msra.mxu0 0.0
    %85 = vmatpush.msra.mxu0 %v61
    %86 = vmatpush.msra.mxu0 %v60
    %87 = vmatmul.f32.gmra.mxu0 %v69
    %v88 = vpop.f32.mrf.mxu0
    %v89 = vadd.f32 %v65, %v88
    %90 = vdwg.mxu0
    %vm91 = vcmask 31744
    %v93 = vsel %vm91, %v56, 0
    %v96 = vsel %vm91, %v57, 0
    %vm98 = vcmask 1043456
    %v100 = vsel %vm98, %v59, 0
    %102 = vmatpush.msra.mxu0 0.0
    %103 = vmatpush.msra.mxu0 0.0
    %104 = vmatpush.msra.mxu0 0.0
    %105 = vmatpush.msra.mxu0 0.0
    %106 = vmatpush.msra.mxu0 0.0
    %107 = vmatpush.msra.mxu0 0.0
    %108 = vmatpush.msra.mxu0 0.0
    %109 = vmatpush.msra.mxu0 0.0
    %110 = vmatpush.msra.mxu0 0.0
    %111 = vmatpush.msra.mxu0 0.0
    %112 = vmatpush.msra.mxu0 0.0
    %113 = vmatpush.msra.mxu0 0.0
    %114 = vmatpush.msra.mxu0 0.0
    %115 = vmatpush.msra.mxu0 0.0
    %116 = vmatpush.msra.mxu0 0.0
    %117 = vmatpush.msra.mxu0 %v100
    %118 = vmatmul.f32.gmra.mxu0 %v93
    %v119 = vpop.f32.mrf.mxu0
    %v120 = vadd.f32 0.0, %v119
    %121 = vmatmul.f32.gmra.mxu0 %v96
    %v122 = vpop.f32.mrf.mxu0
    %v123 = vadd.f32 0.0, %v122
    %124 = vdwg.mxu0
    %v125 = vadd.f32 %v120, %v89
    %v126 = vmax.f32 %v125, 0.0
    %v127 = vadd.f32 %v123, %v89
    %v128 = vmax.f32 %v127, 0.0
    %v130 = vperm.slane %v63, 0
    %v132 = vmul.f32 %v126, %v130
    %vm133 = vcmask 261120
    %v134 = vsel %vm133, %v132, 0.0
    %135 = vadd.xlane.f32.xlu0 %v134
    %v136 = vpop.xlane.xlu0 %135
    %v137 = vstv %s55
    %v138 = vadd.f32 %v136, %v137
    %v139 = vmul.f32 %v128, %v130
    %v140 = vsel %vm133, %v139, 0.0
    %141 = vadd.xlane.f32.xlu0 %v140
    %v142 = vpop.xlane.xlu0 %141
    %v143 = vadd.f32 %v142, %v137
    %v144 = vmin.f32 %v138, 0.0
    %v145 = vand.u32 2147483647, %v138
    %v146 = vsub.f32 0.0, %v145
    %v147 = vmul.f32 %v146, 1.442695
    %v148 = vpow.pop %v147
    %v149 = vadd.f32 %v148, 1.0
    %v150 = vlog2.pop %v149
    %v151 = vmul.f32 %v150, 0.6931472
    %v152 = vsub.f32 %v144, %v151
    %v153 = vsub.f32 0.0, %v143
    %v154 = vmin.f32 %v153, 0.0
    %v155 = vand.u32 2147483647, %v153
    %v156 = vsub.f32 0.0, %v155
    %v157 = vmul.f32 %v156, 1.442695
    %v158 = vpow.pop %v157
    %v159 = vadd.f32 %v158, 1.0
    %v160 = vlog2.pop %v159
    %v161 = vmul.f32 %v160, 0.6931472
    %v162 = vsub.f32 %v154, %v161
    %v163 = vmul.f32 %v152, 1.442695
    %v164 = vpow.pop %v163
    %v165 = vmul.f32 %v162, 1.442695
    %v166 = vpow.pop %v165
    %v167 = vsub.f32 1.0, %v166
    %v168 = vrot.slane %v152, 4
    %v169 = vadd.f32 %v152, %v168
    %v170 = vrot.slane %v169, 2
    %v171 = vadd.f32 %v169, %v170
    %v172 = vrot.slane %v171, 1
    %v173 = vadd.f32 %v171, %v172
    %v174 = vsub.f32 0.0, %v173
    %v175 = vmul.f32 %v174, 0.125
    %v176 = vrot.slane %v162, 4
    %v177 = vadd.f32 %v162, %v176
    %v178 = vrot.slane %v177, 2
    %v179 = vadd.f32 %v177, %v178
    %v180 = vrot.slane %v179, 1
    %v181 = vadd.f32 %v179, %v180
    %v182 = vsub.f32 0.0, %v181
    %v183 = vmul.f32 %v182, 0.125
    %v184 = vadd.f32 %v164, %v167
    %v185 = vsub.f32 %v184, 1.0
    %v186 = vrot.slane %v185, 4
    %v187 = vadd.f32 %v185, %v186
    %v188 = vrot.slane %v187, 2
    %v189 = vadd.f32 %v187, %v188
    %v190 = vrot.slane %v189, 1
    %v191 = vadd.f32 %v189, %v190
    %v192 = vmul.f32 %v191, 0.125
    %v193 = vmul.f32 %v192, %v192
    %v194 = vadd.f32 %v175, %v183
    %v195 = vmul.f32 %v194, 0.5
    %v196 = vstv %s54
    %v197 = vmul.f32 %v196, %v193
    %v198 = vadd.f32 %v195, %v197
    %vm199 = vcmask 0
    %200 = vst.msk [vmem:[#allocation7] sm:$0x1] %vm199, %v198
    // Predicated region
    $region38: #{tpu_custom_call.1} parent=1 // pred_check
      _
    $region39: #{tpu_custom_call.1} parent=1 // pred_check_branch
      %202 = sbr.rel (0) target = $region41
    $region40: #{tpu_custom_call.1} parent=1 // pred_region
      %204 = vsyncadd [#allocation4], 0
      %s206 = sshll.u32 [#allocation7], 4
      %s207 = int_to_ptr.vmem [resolvable:$true] %s206
      %s208 = sshll.u32 %s7, 4
      %s209 = int_to_ptr.hbm [resolvable:$true] %s208
      %211 = dma.vmem_to_hbm [thread:$0]  %s207, 16, %s209, [#allocation4]
    $region41: #{tpu_custom_call.1} parent=1 // pred_fallthru
      _
    // Predicated region
    $region42: #{tpu_custom_call.1} parent=1 // pred_check
      _
    $region43: #{tpu_custom_call.1} parent=1 // pred_check_branch
      %213 = sbr.rel (0) target = $region45
    $region44: #{tpu_custom_call.1} parent=1 // pred_region
      %215 = dma.done [#allocation4], 16
    $region45: #{tpu_custom_call.1} parent=1 // pred_fallthru
      _
    %216 = vsyncpa [#allocation3], 1
    %217 = vsyncpa [#allocation4], 1
    %218 = vsyncpa [#allocation5], 1

</llo_original>
